<compile_context>
chip_gen: v5e
topology: v5e:2x2
jax: 0.10.0
libtpu: 0.0.40
codegen_flags: <defaults>
</compile_context>

<pallas_src>
import math
import functools

import jax
import jax.numpy as jnp
from jax.experimental import pallas as pl
from jax.experimental.pallas import tpu as pltpu


def _attention_kernel(x_ref, wqkv_ref, bias_ref, wp_heads_ref, o_ref, *,
                      num_heads, head_dim, in_dim, scale, residual_before,
                      compute_dtype):
    # x_ref:        (S, D)              (batch dim squeezed away by BlockSpec)
    # wqkv_ref:     (D, 3*in_dim)       fused [Wq | Wk | Wv]
    # bias_ref:     (1, 4*in_dim)       fused [bq | bk | bv | bp]
    # wp_heads_ref: (H, hd, in_dim)     Wp reshaped head-major on the host
    # o_ref:        (S, in_dim)
    x = x_ref[...]

    b_qkv = bias_ref[:, : 3 * in_dim]            # (1, 3*in_dim)
    b_proj = bias_ref[:, 3 * in_dim:]            # (1, in_dim)

    # ---- fused Q/K/V projection: one lane-dense (S, 3*in_dim) MXU pass ----
    qkv = jnp.dot(x.astype(compute_dtype),
                  wqkv_ref[...].astype(compute_dtype),
                  preferred_element_type=jnp.float32) + b_qkv   # (S, 3*in_dim)

    q2d = qkv[:, :in_dim]
    k2d = qkv[:, in_dim:2 * in_dim]
    v2d = qkv[:, 2 * in_dim:]                    # kept 2-D for residual_before

    # ---- head-major (H, S, hd) slabs (single relayout, replaces the old
    #      unrolled per-head loop whose tiles all stayed live) ----
    def to_heads(t2d):
        return jnp.stack(
            [t2d[:, h * head_dim:(h + 1) * head_dim] for h in range(num_heads)],
            axis=0).astype(compute_dtype)

    qh = to_heads(q2d)                           # (H, S, hd)
    kh = to_heads(k2d)
    vh = to_heads(v2d)

    # ---- batched scaled-dot-product attention over all heads at once.
    #      Contraction on the last dim of both operands == trans-B semantics,
    #      so no explicit kh.T / XLU transpose is emitted. ----
    scores = jnp.einsum('hqd,hkd->hqk', qh, kh,
                        preferred_element_type=jnp.float32) * scale
    scores = scores - jnp.max(scores, axis=-1, keepdims=True)
    probs = jnp.exp(scores)
    probs = probs * pl.reciprocal(jnp.sum(probs, axis=-1, keepdims=True),
                                  approx=True)   # EUP vrcp slot, ~free

    # attn_drop is identity (p=0.0, eval mode)
    ctx = jnp.einsum('hqk,hkd->hqd', probs.astype(compute_dtype), vh,
                     preferred_element_type=jnp.float32)        # (H, S, hd)

    # ---- head merge fused into the output projection:
    #      concat_h(ctx_h) @ Wp  ==  sum_h ctx_h @ Wp[h]
    #      -> batched matmul + major-dim sum, no lane concatenation. ----
    partial = jnp.einsum('hqd,hdn->hqn', ctx.astype(compute_dtype),
                         wp_heads_ref[...].astype(compute_dtype),
                         preferred_element_type=jnp.float32)    # (H, S, in_dim)
    out = jnp.sum(partial, axis=0) + b_proj                     # (S, in_dim)
    # proj Dropout is identity (p=0.0, eval mode)

    if residual_before:
        out = out + v2d      # v rearranged back 'b n v d -> b v (n d)' == v2d

    o_ref[...] = out.astype(o_ref.dtype)


def attention_pallas(x, params, *, num_heads, scale, residual_before=False,
                     compute_dtype=jnp.float32):
    """x: (B, S, D) float32.  params: dict of weights (transposed) and biases.

    compute_dtype=jnp.bfloat16 feeds the MXU bf16 inputs (f32 accumulation) for
    higher throughput on v6e/v7x; default f32 keeps full precision.
    """
    B, S, D = x.shape
    in_dim = params["wq"].shape[1]
    head_dim = in_dim // num_heads

    # Host-side one-time packing (in a real model this would be cached with the
    # weights): fused QKV weight, single fused bias buffer, head-split Wp.
    wqkv = jnp.concatenate([params["wq"], params["wk"], params["wv"]], axis=1)
    bias = jnp.concatenate([params["bq"], params["bk"], params["bv"],
                            params["bp"]], axis=1)               # (1, 4*in_dim)
    wp_heads = params["wp"].reshape(num_heads, head_dim, in_dim)

    kernel = functools.partial(
        _attention_kernel,
        num_heads=num_heads, head_dim=head_dim, in_dim=in_dim, scale=scale,
        residual_before=residual_before, compute_dtype=compute_dtype)

    return pl.pallas_call(
        kernel,
        out_shape=jax.ShapeDtypeStruct((B, S, in_dim), x.dtype),
        grid_spec=pltpu.PrefetchScalarGridSpec(
            num_scalar_prefetch=0,
            grid=(B,),
            in_specs=[
                # Squeezed batch dim -> kernel sees a clean 2-D (S, D) tile.
                pl.BlockSpec((pl.Squeezed(), S, D), lambda b: (b, 0, 0)),
                # Weights/biases: constant index_map (fetched once, reused).
                pl.BlockSpec((D, 3 * in_dim), lambda b: (0, 0)),
                pl.BlockSpec((1, 4 * in_dim), lambda b: (0, 0)),
                pl.BlockSpec((num_heads, head_dim, in_dim),
                             lambda b: (0, 0, 0)),
            ],
            out_specs=pl.BlockSpec((pl.Squeezed(), S, in_dim),
                                   lambda b: (b, 0, 0)),
        ),
        compiler_params=pltpu.CompilerParams(
            dimension_semantics=("parallel",),      # batch shards across TCs
            vmem_limit_bytes=32 * 1024 * 1024,      # fits all generations
        ),
    )(x, wqkv, bias, wp_heads)


def attention_reference(x, params, *, num_heads, scale, residual_before=False):
    """Pure-JAX reference mirroring the PyTorch forward (eval mode)."""
    B, S, D = x.shape
    in_dim = params["wq"].shape[1]
    hd = in_dim // num_heads

    def lin(t, w, b):
        return t @ w + b[0]

    def split_heads(t):   # (B, S, in_dim) -> (B, H, S, hd)
        return t.reshape(B, S, num_heads, hd).transpose(0, 2, 1, 3)

    q = split_heads(lin(x, params["wq"], params["bq"]))
    k = split_heads(lin(x, params["wk"], params["bk"]))
    v = split_heads(lin(x, params["wv"], params["bv"]))

    attn = jnp.einsum("bnqd,bnkd->bnqk", q, k) * scale
    attn = jax.nn.softmax(attn, axis=-1)
    ctx = jnp.einsum("bnqk,bnkd->bnqd", attn, v)
    ctx = ctx.transpose(0, 2, 1, 3).reshape(B, S, in_dim)
    out = lin(ctx, params["wp"], params["bp"])
    if residual_before:
        out = out + v.transpose(0, 2, 1, 3).reshape(B, S, in_dim)
    return out


def init_params(key, dim, in_dim):
    """Deterministic synthetic parameters (torch Linear shapes, transposed)."""
    ks = jax.random.split(key, 8)
    bound = 1.0 / math.sqrt(dim)

    def w(k, fan_in, fan_out):
        return jax.random.uniform(k, (fan_in, fan_out), jnp.float32, -bound, bound)

    def b(k, fan_out):
        return jax.random.uniform(k, (1, fan_out), jnp.float32, -bound, bound)

    return {
        "wq": w(ks[0], dim, in_dim), "bq": b(ks[1], in_dim),
        "wk": w(ks[2], dim, in_dim), "bk": b(ks[3], in_dim),
        "wv": w(ks[4], dim, in_dim), "bv": b(ks[5], in_dim),
        "wp": w(ks[6], in_dim, in_dim), "bp": b(ks[7], in_dim),
    }


if __name__ == "__main__":
    # Small shapes consistent with the module: batch=2, seq=8, dim=32, heads=4.
    B, S, DIM, HEADS = 2, 8, 32, 4
    IN_DIM = DIM                      # in_dim defaults to dim
    HEAD_DIM = IN_DIM // HEADS
    SCALE = HEAD_DIM ** (-0.5)        # qk_scale=None default

    key = jax.random.PRNGKey(0)
    kx, kp = jax.random.split(key)
    x = jax.random.normal(kx, (B, S, DIM), jnp.float32)
    params = init_params(kp, DIM, IN_DIM)

    # f32 path (default module config: residual_before=False).
    out = attention_pallas(x, params, num_heads=HEADS, scale=SCALE,
                           residual_before=False)
    out = jax.block_until_ready(out)
    ref = attention_reference(x, params, num_heads=HEADS, scale=SCALE,
                              residual_before=False)
    assert out.shape == (B, S, IN_DIM)
    assert jnp.allclose(out, ref, atol=5e-3, rtol=5e-3), "f32 mismatch vs reference"

    # residual_before=True path.
    out_r = attention_pallas(x, params, num_heads=HEADS, scale=SCALE,
                             residual_before=True)
    out_r = jax.block_until_ready(out_r)
    ref_r = attention_reference(x, params, num_heads=HEADS, scale=SCALE,
                                residual_before=True)
    assert jnp.allclose(out_r, ref_r, atol=5e-3, rtol=5e-3), "residual mismatch"

    # bf16-MXU-input path (v6e/v7x throughput option), looser tolerance.
    out_bf = attention_pallas(x, params, num_heads=HEADS, scale=SCALE,
                              residual_before=False,
                              compute_dtype=jnp.bfloat16)
    out_bf = jax.block_until_ready(out_bf)
    assert jnp.allclose(out_bf, ref, atol=5e-2, rtol=5e-2), "bf16 mismatch"

    # TODO(synk): attn_drop / proj Dropout are identity (p=0.0, eval mode); no
    # stochastic dropout path is implemented in the kernel.
    print("KERNEL_OK")
</pallas_src>

<mosaic_0001>
module attributes {stable_mosaic.version = 11 : i64} {
  func.func @_attention_kernel(%arg0: i32, %arg1: memref<1x8x32xf32, #tpu.memory_space<vmem>>, %arg2: memref<32x96xf32, #tpu.memory_space<vmem>>, %arg3: memref<1x128xf32, #tpu.memory_space<vmem>>, %arg4: memref<4x8x32xf32, #tpu.memory_space<vmem>>, %arg5: memref<1x8x32xf32, #tpu.memory_space<vmem>>) attributes {dimension_semantics = [#tpu.dimension_semantics<parallel>], iteration_bounds = array<i64: 2>, scalar_prefetch = 0 : i64, scratch_operands = 0 : i64, tpu.core_type = #tpu.core_type<tc>, window_params = [{transform_indices = @transform_0, window_bounds = array<i64: 1, 8, 32>}, {pipeline_mode = #tpu.pipeline_mode<synchronous>, transform_indices = @transform_1, window_bounds = array<i64: 32, 96>}, {pipeline_mode = #tpu.pipeline_mode<synchronous>, transform_indices = @transform_2, window_bounds = array<i64: 1, 128>}, {pipeline_mode = #tpu.pipeline_mode<synchronous>, transform_indices = @transform_3, window_bounds = array<i64: 4, 8, 32>}, {transform_indices = @transform_4, window_bounds = array<i64: 1, 8, 32>}]} {
    %c0 = arith.constant 0 : index
    %c0_0 = arith.constant 0 : index
    %c0_1 = arith.constant 0 : index
    %0 = vector.load %arg1[%c0, %c0_0, %c0_1] : memref<1x8x32xf32, #tpu.memory_space<vmem>>, vector<1x8x32xf32>
    %1 = vector.shape_cast %0 : vector<1x8x32xf32> to vector<8x32xf32>
    %c0_2 = arith.constant 0 : index
    %c0_3 = arith.constant 0 : index
    %2 = vector.load %arg3[%c0_2, %c0_3] : memref<1x128xf32, #tpu.memory_space<vmem>>, vector<1x96xf32>
    %c0_4 = arith.constant 0 : index
    %c96 = arith.constant 96 : index
    %3 = vector.load %arg3[%c0_4, %c96] : memref<1x128xf32, #tpu.memory_space<vmem>>, vector<1x32xf32>
    %c0_5 = arith.constant 0 : index
    %c0_6 = arith.constant 0 : index
    %4 = vector.load %arg2[%c0_5, %c0_6] : memref<32x96xf32, #tpu.memory_space<vmem>>, vector<32x96xf32>
    %cst = arith.constant dense<0.000000e+00> : vector<8x96xf32>
    %5 = tpu.matmul %1, %4, %cst {dimension_numbers = #tpu.dot_dimension_numbers<[1], [0], [0], [1], [0, 0, 1, 1], [], []>} : vector<8x32xf32>, vector<32x96xf32>, vector<8x96xf32> -> vector<8x96xf32>
    %6 = vector.broadcast %2 : vector<1x96xf32> to vector<8x96xf32>
    %7 = arith.addf %5, %6 : vector<8x96xf32>
    %8 = vector.extract_strided_slice %7 {offsets = [0, 0], sizes = [8, 32], strides = [1, 1]} : vector<8x96xf32> to vector<8x32xf32>
    %9 = vector.extract_strided_slice %7 {offsets = [0, 32], sizes = [8, 32], strides = [1, 1]} : vector<8x96xf32> to vector<8x32xf32>
    %10 = vector.extract_strided_slice %7 {offsets = [0, 64], sizes = [8, 32], strides = [1, 1]} : vector<8x96xf32> to vector<8x32xf32>
    %11 = vector.extract_strided_slice %8 {offsets = [0, 0], sizes = [8, 8], strides = [1, 1]} : vector<8x32xf32> to vector<8x8xf32>
    %12 = vector.extract_strided_slice %8 {offsets = [0, 8], sizes = [8, 8], strides = [1, 1]} : vector<8x32xf32> to vector<8x8xf32>
    %13 = vector.extract_strided_slice %8 {offsets = [0, 16], sizes = [8, 8], strides = [1, 1]} : vector<8x32xf32> to vector<8x8xf32>
    %14 = vector.extract_strided_slice %8 {offsets = [0, 24], sizes = [8, 8], strides = [1, 1]} : vector<8x32xf32> to vector<8x8xf32>
    %15 = vector.shape_cast %11 : vector<8x8xf32> to vector<1x8x8xf32>
    %16 = vector.shape_cast %12 : vector<8x8xf32> to vector<1x8x8xf32>
    %17 = vector.shape_cast %13 : vector<8x8xf32> to vector<1x8x8xf32>
    %18 = vector.shape_cast %14 : vector<8x8xf32> to vector<1x8x8xf32>
    %19 = tpu.concatenate %15, %16, %17, %18 in 0 : vector<1x8x8xf32>, vector<1x8x8xf32>, vector<1x8x8xf32>, vector<1x8x8xf32> -> vector<4x8x8xf32>
    %20 = vector.extract_strided_slice %9 {offsets = [0, 0], sizes = [8, 8], strides = [1, 1]} : vector<8x32xf32> to vector<8x8xf32>
    %21 = vector.extract_strided_slice %9 {offsets = [0, 8], sizes = [8, 8], strides = [1, 1]} : vector<8x32xf32> to vector<8x8xf32>
    %22 = vector.extract_strided_slice %9 {offsets = [0, 16], sizes = [8, 8], strides = [1, 1]} : vector<8x32xf32> to vector<8x8xf32>
    %23 = vector.extract_strided_slice %9 {offsets = [0, 24], sizes = [8, 8], strides = [1, 1]} : vector<8x32xf32> to vector<8x8xf32>
    %24 = vector.shape_cast %20 : vector<8x8xf32> to vector<1x8x8xf32>
    %25 = vector.shape_cast %21 : vector<8x8xf32> to vector<1x8x8xf32>
    %26 = vector.shape_cast %22 : vector<8x8xf32> to vector<1x8x8xf32>
    %27 = vector.shape_cast %23 : vector<8x8xf32> to vector<1x8x8xf32>
    %28 = tpu.concatenate %24, %25, %26, %27 in 0 : vector<1x8x8xf32>, vector<1x8x8xf32>, vector<1x8x8xf32>, vector<1x8x8xf32> -> vector<4x8x8xf32>
    %29 = vector.extract_strided_slice %10 {offsets = [0, 0], sizes = [8, 8], strides = [1, 1]} : vector<8x32xf32> to vector<8x8xf32>
    %30 = vector.extract_strided_slice %10 {offsets = [0, 8], sizes = [8, 8], strides = [1, 1]} : vector<8x32xf32> to vector<8x8xf32>
    %31 = vector.extract_strided_slice %10 {offsets = [0, 16], sizes = [8, 8], strides = [1, 1]} : vector<8x32xf32> to vector<8x8xf32>
    %32 = vector.extract_strided_slice %10 {offsets = [0, 24], sizes = [8, 8], strides = [1, 1]} : vector<8x32xf32> to vector<8x8xf32>
    %33 = vector.shape_cast %29 : vector<8x8xf32> to vector<1x8x8xf32>
    %34 = vector.shape_cast %30 : vector<8x8xf32> to vector<1x8x8xf32>
    %35 = vector.shape_cast %31 : vector<8x8xf32> to vector<1x8x8xf32>
    %36 = vector.shape_cast %32 : vector<8x8xf32> to vector<1x8x8xf32>
    %37 = tpu.concatenate %33, %34, %35, %36 in 0 : vector<1x8x8xf32>, vector<1x8x8xf32>, vector<1x8x8xf32>, vector<1x8x8xf32> -> vector<4x8x8xf32>
    "tpu.trace_start"() <{level = 10 : i32, message = "hqd,hkd->hqk"}> : () -> ()
    %cst_7 = arith.constant dense<0.000000e+00> : vector<4x8x8xf32>
    %38 = tpu.matmul %19, %28, %cst_7 {dimension_numbers = #tpu.dot_dimension_numbers<[2], [2], [1], [1], [0, 0, 0, 1, 1, 1], [0], [0]>} : vector<4x8x8xf32>, vector<4x8x8xf32>, vector<4x8x8xf32> -> vector<4x8x8xf32>
    "tpu.trace_stop"() : () -> ()
    %cst_8 = arith.constant 0.353553385 : f32
    %39 = vector.broadcast %cst_8 : f32 to vector<4x8x8xf32>
    %40 = arith.mulf %38, %39 : vector<4x8x8xf32>
    %cst_9 = arith.constant dense<0xFF800000> : vector<4x8xf32>
    %41 = vector.multi_reduction <maximumf>, %40, %cst_9 [2] : vector<4x8x8xf32> to vector<4x8xf32>
    %42 = vector.shape_cast %41 : vector<4x8xf32> to vector<4x8x1xf32>
    %43 = vector.broadcast %42 : vector<4x8x1xf32> to vector<4x8x8xf32>
    %44 = arith.subf %40, %43 : vector<4x8x8xf32>
    %45 = math.exp %44 : vector<4x8x8xf32>
    %cst_10 = arith.constant dense<0.000000e+00> : vector<4x8xf32>
    %46 = vector.multi_reduction <add>, %45, %cst_10 [2] : vector<4x8x8xf32> to vector<4x8xf32>
    %47 = vector.shape_cast %46 : vector<4x8xf32> to vector<4x8x1xf32>
    %48 = tpu.reciprocal %47 {approx = true} : vector<4x8x1xf32> -> vector<4x8x1xf32>
    %49 = vector.broadcast %48 : vector<4x8x1xf32> to vector<4x8x8xf32>
    %50 = arith.mulf %45, %49 : vector<4x8x8xf32>
    "tpu.trace_start"() <{level = 10 : i32, message = "hqk,hkd->hqd"}> : () -> ()
    %cst_11 = arith.constant dense<0.000000e+00> : vector<4x8x8xf32>
    %51 = tpu.matmul %50, %37, %cst_11 {dimension_numbers = #tpu.dot_dimension_numbers<[2], [1], [1], [2], [0, 0, 0, 1, 1, 2], [0], [0]>} : vector<4x8x8xf32>, vector<4x8x8xf32>, vector<4x8x8xf32> -> vector<4x8x8xf32>
    "tpu.trace_stop"() : () -> ()
    %c0_12 = arith.constant 0 : index
    %c0_13 = arith.constant 0 : index
    %c0_14 = arith.constant 0 : index
    %52 = vector.load %arg4[%c0_12, %c0_13, %c0_14] : memref<4x8x32xf32, #tpu.memory_space<vmem>>, vector<4x8x32xf32>
    "tpu.trace_start"() <{level = 10 : i32, message = "hqd,hdn->hqn"}> : () -> ()
    %cst_15 = arith.constant dense<0.000000e+00> : vector<4x8x32xf32>
    %53 = tpu.matmul %51, %52, %cst_15 {dimension_numbers = #tpu.dot_dimension_numbers<[2], [1], [1], [2], [0, 0, 0, 1, 1, 2], [0], [0]>} : vector<4x8x8xf32>, vector<4x8x32xf32>, vector<4x8x32xf32> -> vector<4x8x32xf32>
    "tpu.trace_stop"() : () -> ()
    %cst_16 = arith.constant dense<0.000000e+00> : vector<8x32xf32>
    %54 = vector.multi_reduction <add>, %53, %cst_16 [0] : vector<4x8x32xf32> to vector<8x32xf32>
    %55 = vector.broadcast %3 : vector<1x32xf32> to vector<8x32xf32>
    %56 = arith.addf %54, %55 : vector<8x32xf32>
    %c0_17 = arith.constant 0 : index
    %c0_18 = arith.constant 0 : index
    %c0_19 = arith.constant 0 : index
    %57 = vector.load %arg5[%c0_17, %c0_18, %c0_19] : memref<1x8x32xf32, #tpu.memory_space<vmem>>, vector<1x8x32xf32>
    %58 = vector.shape_cast %57 : vector<1x8x32xf32> to vector<8x32xf32>
    %59 = vector.shape_cast %56 : vector<8x32xf32> to vector<1x8x32xf32>
    tpu.vector_store %arg5[%c0_17, %c0_18, %c0_19], %59 {strides = array<i32>} : memref<1x8x32xf32, #tpu.memory_space<vmem>>, vector<1x8x32xf32>,
    return
  }
  func.func @transform_0(%arg0: i32) -> (i32, i32, i32) {
    %c0_i32 = arith.constant 0 : i32
    %c0_i32_0 = arith.constant 0 : i32
    %c0_i32_1 = arith.constant 0 : i32
    return %arg0, %c0_i32, %c0_i32_0 : i32, i32, i32
  }
  func.func @transform_1(%arg0: i32) -> (i32, i32) {
    %c0_i32 = arith.constant 0 : i32
    %c0_i32_0 = arith.constant 0 : i32
    %c0_i32_1 = arith.constant 0 : i32
    return %c0_i32, %c0_i32_0 : i32, i32
  }
  func.func @transform_2(%arg0: i32) -> (i32, i32) {
    %c0_i32 = arith.constant 0 : i32
    %c0_i32_0 = arith.constant 0 : i32
    %c0_i32_1 = arith.constant 0 : i32
    return %c0_i32, %c0_i32_0 : i32, i32
  }
  func.func @transform_3(%arg0: i32) -> (i32, i32, i32) {
    %c0_i32 = arith.constant 0 : i32
    %c0_i32_0 = arith.constant 0 : i32
    %c0_i32_1 = arith.constant 0 : i32
    %c0_i32_2 = arith.constant 0 : i32
    return %c0_i32, %c0_i32_0, %c0_i32_1 : i32, i32, i32
  }
  func.func @transform_4(%arg0: i32) -> (i32, i32, i32) {
    %c0_i32 = arith.constant 0 : i32
    %c0_i32_0 = arith.constant 0 : i32
    %c0_i32_1 = arith.constant 0 : i32
    return %arg0, %c0_i32, %c0_i32_0 : i32, i32, i32
  }
}

</mosaic_0001>

<llo_original>
// kernel: tpu_custom_call.1
$region0: #{tpu_custom_call.1}
  #allocation0 [shape = 'u32[]', space=smem, size = 0x4, offset = 0x4, fixed_abs, tag = 'smem constant byte address 0x4 - core index']
  #allocation1 [shape = 'u32[72,128]{1,0:T(1,128)}', space=vmem, size = 0x9000, scoped, tag = 'internal scratch']
  %s0 = inlined_call_operand.hbm [shape: f32[2,8,32], index: 0, kind: input, shape index: {}]
  %s1 = inlined_call_operand.hbm [shape: f32[32,96], index: 1, kind: input, shape index: {}]
  %s2 = inlined_call_operand.vmem [shape: f32[1,128], index: 2, kind: input, shape index: {}]
  %s3 = inlined_call_operand.hbm [shape: f32[4,8,32], index: 3, kind: input, shape index: {}]
  %s4 = inlined_call_operand.hbm [shape: f32[2,8,32], index: 4, kind: output, shape index: {}]
  %s5 = sld [smem:[#allocation0]]
  $region61: #{tpu_custom_call.1} parent=0
    _
  %s7 = ssub.s32 1, %s5
  %s8 = scalar_select 0, %s7, %s5
  $region1: #{tpu_custom_call.1} parent=0
    #allocation2 [shape = 'u8[8192]{0}', space=vmem, size = 0x2000, scoped, tag = 'input window, operand 0']
    #allocation3 [shape = 's32[2]{0}', space=sflag, size = 0x8, scoped, tag = 'scoped memory for tpu_custom_call.1']
    #allocation4 [shape = 's32[2]{0}', space=sflag, size = 0x8, scoped, tag = 'scoped memory for tpu_custom_call.1']
    #allocation5 [shape = 'u8[16384]{0}', space=vmem, size = 0x4000, scoped, tag = 'input window, operand 1, single buffered']
    #allocation6 [shape = 's32[1]{0}', space=sflag, size = 0x4, scoped, tag = 'scoped memory for tpu_custom_call.1']
    #allocation7 [shape = 'u8[16384]{0}', space=vmem, size = 0x4000, scoped, tag = 'input window, operand 3, single buffered']
    #allocation8 [shape = 'u8[8192]{0}', space=vmem, size = 0x2000, scoped, tag = 'output window, operand 0']
    %9 = vsyncpa [#allocation3], 0
    %s10 = scalar_lea.sflag [#allocation3], 1
    %11 = vsyncpa %s10, 0
    %12 = vsyncpa [#allocation6], 0
    %13 = vsyncpa [#allocation4], 0
    %s14 = scalar_lea.sflag [#allocation4], 1
    %15 = vsyncpa %s14, 0
    loop: start=0, step=1, limit=4
    $region2: #{tpu_custom_call.1} parent=1 // loop_pre_header
      _
    $region3: #{tpu_custom_call.1} parent=1 // loop_header
      %s17 = sphi 0, %s21
      %p18 = scmp.ge.s32.totalorder %s17, 4
      %s27 = sphi 0, %s29
      %s30 = sphi 0, %s27
      %s31 = sphi 0, %s30
      %s47 = sphi 0, %s31
      %s51 = sphi 0, %s51
      %s53 = sphi 0, %s51
      %s54 = sphi 0, %s53
      %s68 = sphi 0, %s54
      %s72 = sphi 0, %s72
      %s74 = sphi 0, %s72
      %s75 = sphi 0, %s74
      %s89 = sphi 0, %s75
      %s93 = sphi 0, %s93
      %s95 = sphi 0, %s93
      %s96 = sphi 0, %s95
      %s110 = sphi 0, %s96
      %s116 = sphi 0, %s118
      %s119 = sphi 0, %s116
      %s120 = sphi 0, %s119
      %s136 = sphi 0, %s120
    $region4: #{tpu_custom_call.1} parent=1 // loop_header_branch
      %20 = sbr.rel (%p18) target = $region8
    $region5: #{tpu_custom_call.1} parent=1 // loop_body
      %s22 = ssub.s32 %s17, 1
      %s23 = ssub.s32 %s17, 2
      %s24 = sadd.s32 %s17, 1
      %s25 = ssub.s32 %s17, %s24
      %p26 = scmp.eq.s32.totalorder %s25, 0
      %s28 = sadd.s32 %s27, 1
      %s29 = scalar_select %p26, %s27, %s28
      %p32 = pneg %p26
      %p33 = scmp.eq.s32.totalorder %s17, 1
      %p34 = por %p32, %p33
      %p35 = scmp.ne.s32.totalorder %s27, %s30
      %p36 = scmp.eq.s32.totalorder %s17, 0
      %p37 = por %p35, %p36
      %p38 = scmp.ne.s32.totalorder %s27, %s30
      %p39 = scmp.eq.s32.totalorder %s22, 1
      %p40 = por %p38, %p39
      %p41 = scmp.ne.s32.totalorder %s30, %s31
      %p42 = scmp.eq.s32.totalorder %s22, 0
      %p43 = por %p41, %p42
      %p44 = scmp.ne.s32.totalorder %s30, %s31
      %p45 = scmp.eq.s32.totalorder %s23, 1
      %p46 = por %p44, %p45
      %p48 = scmp.ne.s32.totalorder %s31, %s47
      %p49 = scmp.eq.s32.totalorder %s23, 0
      %p50 = por %p48, %p49
      %s52 = sadd.s32 %s51, 1
      %p55 = scmp.eq.s32.totalorder %s17, 1
      %p56 = scmp.ne.s32.totalorder %s51, %s53
      %p57 = scmp.eq.s32.totalorder %s17, 0
      %p58 = por %p56, %p57
      %p59 = scmp.ne.s32.totalorder %s51, %s53
      %p60 = scmp.eq.s32.totalorder %s22, 1
      %p61 = por %p59, %p60
      %p62 = scmp.ne.s32.totalorder %s53, %s54
      %p63 = scmp.eq.s32.totalorder %s22, 0
      %p64 = por %p62, %p63
      %p65 = scmp.ne.s32.totalorder %s53, %s54
      %p66 = scmp.eq.s32.totalorder %s23, 1
      %p67 = por %p65, %p66
      %p69 = scmp.ne.s32.totalorder %s54, %s68
      %p70 = scmp.eq.s32.totalorder %s23, 0
      %p71 = por %p69, %p70
      %s73 = sadd.s32 %s72, 1
      %p76 = scmp.eq.s32.totalorder %s17, 1
      %p77 = scmp.ne.s32.totalorder %s72, %s74
      %p78 = scmp.eq.s32.totalorder %s17, 0
      %p79 = por %p77, %p78
      %p80 = scmp.ne.s32.totalorder %s72, %s74
      %p81 = scmp.eq.s32.totalorder %s22, 1
      %p82 = por %p80, %p81
      %p83 = scmp.ne.s32.totalorder %s74, %s75
      %p84 = scmp.eq.s32.totalorder %s22, 0
      %p85 = por %p83, %p84
      %p86 = scmp.ne.s32.totalorder %s74, %s75
      %p87 = scmp.eq.s32.totalorder %s23, 1
      %p88 = por %p86, %p87
      %p90 = scmp.ne.s32.totalorder %s75, %s89
      %p91 = scmp.eq.s32.totalorder %s23, 0
      %p92 = por %p90, %p91
      %s94 = sadd.s32 %s93, 1
      %p97 = scmp.eq.s32.totalorder %s17, 1
      %p98 = scmp.ne.s32.totalorder %s93, %s95
      %p99 = scmp.eq.s32.totalorder %s17, 0
      %p100 = por %p98, %p99
      %p101 = scmp.ne.s32.totalorder %s93, %s95
      %p102 = scmp.eq.s32.totalorder %s22, 1
      %p103 = por %p101, %p102
      %p104 = scmp.ne.s32.totalorder %s95, %s96
      %p105 = scmp.eq.s32.totalorder %s22, 0
      %p106 = por %p104, %p105
      %p107 = scmp.ne.s32.totalorder %s95, %s96
      %p108 = scmp.eq.s32.totalorder %s23, 1
      %p109 = por %p107, %p108
      %p111 = scmp.ne.s32.totalorder %s96, %s110
      %p112 = scmp.eq.s32.totalorder %s23, 0
      %p113 = por %p111, %p112
      %s114 = ssub.s32 %s17, %s24
      %p115 = scmp.eq.s32.totalorder %s114, 0
      %s117 = sadd.s32 %s116, 1
      %s118 = scalar_select %p115, %s116, %s117
      %p121 = pneg %p115
      %p122 = scmp.eq.s32.totalorder %s17, 1
      %p123 = por %p121, %p122
      %p124 = scmp.ne.s32.totalorder %s116, %s119
      %p125 = scmp.eq.s32.totalorder %s17, 0
      %p126 = por %p124, %p125
      %p127 = scmp.ne.s32.totalorder %s116, %s119
      %p128 = scmp.eq.s32.totalorder %s22, 1
      %p129 = por %p127, %p128
      %p130 = scmp.ne.s32.totalorder %s119, %s120
      %p131 = scmp.eq.s32.totalorder %s22, 0
      %p132 = por %p130, %p131
      %p133 = scmp.ne.s32.totalorder %s119, %s120
      %p134 = scmp.eq.s32.totalorder %s23, 1
      %p135 = por %p133, %p134
      %p137 = scmp.ne.s32.totalorder %s120, %s136
      %p138 = scmp.eq.s32.totalorder %s23, 0
      %p139 = por %p137, %p138
      %p140 = scmp.le.s32.totalorder 1, %s17
      %p141 = scmp.lt.s32.totalorder %s17, 3
      %p142 = pnand %p140, %p141
      %p143 = pneg %p142
      // Predicated region
      $region9: #{tpu_custom_call.1} parent=5 // pred_check
        _
      $region10: #{tpu_custom_call.1} parent=5 // pred_check_branch
        %145 = sbr.rel (%p142) target = $region12
      $region11: #{tpu_custom_call.1} parent=5 // pred_region
        %s146 = ssub.s32 %s17, 1
        // Predicated region
        $region13: #{tpu_custom_call.1} parent=11 // pred_check
          %p147 = pneg %p64
        $region14: #{tpu_custom_call.1} parent=11 // pred_check_branch
          %149 = sbr.rel (%p147) target = $region16
        $region15: #{tpu_custom_call.1} parent=11 // pred_region
          %151 = vsyncadd [#allocation6], 0
          %s152 = sshll.u32 %s1, 4
          %s153 = int_to_ptr.hbm [resolvable:$true] %s152
          %s154 = sshll.u32 [#allocation5], 4
          %s155 = int_to_ptr.vmem [resolvable:$true] %s154
          %160 = dma.hbm_to_vmem [thread:$0]  %s153, 512, %s155, [#allocation6], 128, 128, 8
        $region16: #{tpu_custom_call.1} parent=11 // pred_fallthru
          _
        // Predicated region
        $region17: #{tpu_custom_call.1} parent=11 // pred_check
          %p161 = pneg %p85
        $region18: #{tpu_custom_call.1} parent=11 // pred_check_branch
          %163 = sbr.rel (%p161) target = $region20
        $region19: #{tpu_custom_call.1} parent=11 // pred_region
          _
        $region20: #{tpu_custom_call.1} parent=11 // pred_fallthru
          _
        // Predicated region
        $region21: #{tpu_custom_call.1} parent=11 // pred_check
          %p164 = pneg %p106
        $region22: #{tpu_custom_call.1} parent=11 // pred_check_branch
          %166 = sbr.rel (%p164) target = $region24
        $region23: #{tpu_custom_call.1} parent=11 // pred_region
          %168 = vsyncadd [#allocation6], 0
          %s169 = sshll.u32 %s3, 4
          %s170 = int_to_ptr.hbm [resolvable:$true] %s169
          %s171 = sshll.u32 [#allocation7], 4
          %s172 = int_to_ptr.vmem [resolvable:$true] %s171
          %177 = dma.hbm_to_vmem [thread:$0]  %s170, 512, %s172, [#allocation6], 128, 128, 8
        $region24: #{tpu_custom_call.1} parent=11 // pred_fallthru
          _
      $region12: #{tpu_custom_call.1} parent=5 // pred_fallthru
        _
      %p178 = scmp.lt.s32.totalorder %s17, 2
      // Predicated region
      $region25: #{tpu_custom_call.1} parent=5 // pred_check
        %p179 = pneg %p178
      $region26: #{tpu_custom_call.1} parent=5 // pred_check_branch
        %181 = sbr.rel (%p179) target = $region28
      $region27: #{tpu_custom_call.1} parent=5 // pred_region
        // Predicated region
        $region29: #{tpu_custom_call.1} parent=27 // pred_check
          %p182 = pneg %p37
        $region30: #{tpu_custom_call.1} parent=27 // pred_check_branch
          %184 = sbr.rel (%p182) target = $region32
        $region31: #{tpu_custom_call.1} parent=27 // pred_region
          %s185 = sand.u32 %s27, 1
          %s186 = scalar_lea.sflag [#allocation3], %s185
          %s187 = sand.u32 %s27, 1
          %s188 = smul.addr %s187, 8
          %s189 = scalar_lea.vmem [#allocation2], %s188
          %191 = vsyncadd %s186, 0
          %s192 = smul.addr %s17, 8
          %s193 = scalar_lea.hbm %s0, %s192
          %s195 = sshll.u32 %s193, 4
          %s196 = int_to_ptr.hbm [resolvable:$true] %s195
          %s197 = sshll.u32 %s189, 4
          %s198 = int_to_ptr.vmem [resolvable:$true] %s197
          %200 = dma.hbm_to_vmem [thread:$0]  %s196, 128, %s198, %s186
        $region32: #{tpu_custom_call.1} parent=27 // pred_fallthru
          _
      $region28: #{tpu_custom_call.1} parent=5 // pred_fallthru
        _
      %p201 = scmp.le.s32.totalorder 1, %s17
      %p202 = scmp.lt.s32.totalorder %s17, 3
      %p203 = pnand %p201, %p202
      %p204 = pneg %p203
      // Predicated region
      $region33: #{tpu_custom_call.1} parent=5 // pred_check
        _
      $region34: #{tpu_custom_call.1} parent=5 // pred_check_branch
        %206 = sbr.rel (%p203) target = $region36
      $region35: #{tpu_custom_call.1} parent=5 // pred_region
        %s207 = ssub.s32 %s17, 1
        %s208 = sand.u32 %s30, 1
        %s209 = scalar_lea.sflag [#allocation3], %s208
        %s210 = sand.u32 %s30, 1
        %s211 = smul.addr %s210, 8
        %s212 = scalar_lea.vmem [#allocation2], %s211
        // Predicated region
        $region37: #{tpu_custom_call.1} parent=35 // pred_check
          %p213 = pneg %p43
        $region38: #{tpu_custom_call.1} parent=35 // pred_check_branch
          %215 = sbr.rel (%p213) target = $region40
        $region39: #{tpu_custom_call.1} parent=35 // pred_region
          %217 = dma.done %s209, 128
        $region40: #{tpu_custom_call.1} parent=35 // pred_fallthru
          _
        // Predicated region
        $region41: #{tpu_custom_call.1} parent=35 // pred_check
          %p218 = pneg %p64
        $region42: #{tpu_custom_call.1} parent=35 // pred_check_branch
          %220 = sbr.rel (%p218) target = $region44
        $region43: #{tpu_custom_call.1} parent=35 // pred_region
          %222 = dma.done [#allocation6], 512
        $region44: #{tpu_custom_call.1} parent=35 // pred_fallthru
          _
        // Predicated region
        $region45: #{tpu_custom_call.1} parent=35 // pred_check
          %p223 = pneg %p106
        $region46: #{tpu_custom_call.1} parent=35 // pred_check_branch
          %225 = sbr.rel (%p223) target = $region48
        $region47: #{tpu_custom_call.1} parent=35 // pred_region
          %227 = dma.done [#allocation6], 512
        $region48: #{tpu_custom_call.1} parent=35 // pred_fallthru
          _
        %s228 = sand.u32 %s30, 1
        %s229 = scalar_lea.sflag [#allocation3], %s228
        %s230 = sand.u32 %s30, 1
        %s231 = smul.addr %s230, 8
        %s232 = scalar_lea.vmem [#allocation2], %s231
        %p233 = pneg %p43
        %p234 = pneg %p40
        %p235 = pneg %p64
        %p236 = pneg %p61
        %p237 = pneg %p85
        %p238 = pneg %p82
        %p239 = pneg %p106
        %p240 = pneg %p103
        %p241 = pneg %p132
        %p242 = pneg %p129
        %s243 = sand.u32 %s119, 1
        %s244 = scalar_lea.sflag [#allocation4], %s243
        %s245 = sand.u32 %s119, 1
        %s246 = smul.addr %s245, 8
        %s247 = scalar_lea.vmem [#allocation8], %s246
        %v248 = vld [vmem:[%s212] sm:$0xff]
        %v249 = vld [vmem:[%s2] sm:$0x1]
        %v250 = vld [vmem:[#allocation5] sm:$0xff]
        %v251 = vld [vmem:[#allocation5 + $0x8] sm:$0xff]
        %v252 = vld [vmem:[#allocation5 + $0x10] sm:$0xff]
        %v253 = vld [vmem:[#allocation5 + $0x18] sm:$0xff]
        %v255 = vperm.slane %v249, 0
        %vm257 = vcmask 261120
        %v259 = vsel %vm257, %v248, 0
        %261 = vmatpush.msra.mxu0 0.0
        %262 = vmatpush.msra.mxu0 0.0
        %263 = vmatpush.msra.mxu0 0.0
        %264 = vmatpush.msra.mxu0 0.0
        %265 = vmatpush.msra.mxu0 0.0
        %266 = vmatpush.msra.mxu0 0.0
        %267 = vmatpush.msra.mxu0 0.0
        %268 = vmatpush.msra.mxu0 0.0
        %269 = vmatpush.msra.mxu0 0.0
        %270 = vmatpush.msra.mxu0 0.0
        %271 = vmatpush.msra.mxu0 0.0
        %272 = vmatpush.msra.mxu0 0.0
        %273 = vmatpush.msra.mxu0 %v253
        %274 = vmatpush.msra.mxu0 %v252
        %275 = vmatpush.msra.mxu0 %v251
        %276 = vmatpush.msra.mxu0 %v250
        %277 = vmatmul.f32.gmra.mxu0 %v259
        %v278 = vpop.f32.mrf.mxu0
        %v279 = vadd.f32 %v255, %v278
        %280 = vdwg.mxu0
        %282 = vrot.lane.b32.xlu0 %v279, 120
        %v283 = vpop.permute.xlu0 %282
        %284 = vrot.lane.b32.xlu0 %v279, 112
        %v285 = vpop.permute.xlu0 %284
        %286 = vrot.lane.b32.xlu0 %v279, 104
        %v287 = vpop.permute.xlu0 %286
        %288 = vrot.lane.b32.xlu0 %v279, 96
        %v289 = vpop.permute.xlu0 %288
        %vm290 = vcmask 64512
        %v291 = vsel %vm290, %v279, 0
        %v293 = vsel %vm290, %v289, 0
        %295 = vmatpush.xpose.msra.mxu0 0.0
        %296 = vmatpush.xpose.msra.mxu0 0.0
        %297 = vmatpush.xpose.msra.mxu0 0.0
        %298 = vmatpush.xpose.msra.mxu0 0.0
        %299 = vmatpush.xpose.msra.mxu0 0.0
        %300 = vmatpush.xpose.msra.mxu0 0.0
        %301 = vmatpush.xpose.msra.mxu0 0.0
        %302 = vmatpush.xpose.msra.mxu0 0.0
        %303 = vmatpush.xpose.msra.mxu0 0.0
        %304 = vmatpush.xpose.msra.mxu0 0.0
        %305 = vmatpush.xpose.msra.mxu0 0.0
        %306 = vmatpush.xpose.msra.mxu0 0.0
        %307 = vmatpush.xpose.msra.mxu0 0.0
        %308 = vmatpush.xpose.msra.mxu0 0.0
        %309 = vmatpush.xpose.msra.mxu0 0.0
        %310 = vmatpush.xpose.msra.mxu0 %v293
        %311 = vmatmul.f32.gmra.mxu0 %v291
        %v312 = vpop.f32.mrf.mxu0
        %v313 = vadd.f32 0.0, %v312
        %314 = vdwg.mxu0
        %315 = vrot.lane.b32.xlu0 %v283, 96
        %v316 = vpop.permute.xlu0 %315
        %v317 = vsel %vm290, %v283, 0
        %v319 = vsel %vm290, %v316, 0
        %321 = vmatpush.xpose.msra.mxu0 0.0
        %322 = vmatpush.xpose.msra.mxu0 0.0
        %323 = vmatpush.xpose.msra.mxu0 0.0
        %324 = vmatpush.xpose.msra.mxu0 0.0
        %325 = vmatpush.xpose.msra.mxu0 0.0
        %326 = vmatpush.xpose.msra.mxu0 0.0
        %327 = vmatpush.xpose.msra.mxu0 0.0
        %328 = vmatpush.xpose.msra.mxu0 0.0
        %329 = vmatpush.xpose.msra.mxu0 0.0
        %330 = vmatpush.xpose.msra.mxu0 0.0
        %331 = vmatpush.xpose.msra.mxu0 0.0
        %332 = vmatpush.xpose.msra.mxu0 0.0
        %333 = vmatpush.xpose.msra.mxu0 0.0
        %334 = vmatpush.xpose.msra.mxu0 0.0
        %335 = vmatpush.xpose.msra.mxu0 0.0
        %336 = vmatpush.xpose.msra.mxu0 %v319
        %337 = vmatmul.f32.gmra.mxu0 %v317
        %v338 = vpop.f32.mrf.mxu0
        %v339 = vadd.f32 0.0, %v338
        %340 = vdwg.mxu0
        %341 = vrot.lane.b32.xlu0 %v285, 96
        %v342 = vpop.permute.xlu0 %341
        %v343 = vsel %vm290, %v285, 0
        %v345 = vsel %vm290, %v342, 0
        %347 = vmatpush.xpose.msra.mxu0 0.0
        %348 = vmatpush.xpose.msra.mxu0 0.0
        %349 = vmatpush.xpose.msra.mxu0 0.0
        %350 = vmatpush.xpose.msra.mxu0 0.0
        %351 = vmatpush.xpose.msra.mxu0 0.0
        %352 = vmatpush.xpose.msra.mxu0 0.0
        %353 = vmatpush.xpose.msra.mxu0 0.0
        %354 = vmatpush.xpose.msra.mxu0 0.0
        %355 = vmatpush.xpose.msra.mxu0 0.0
        %356 = vmatpush.xpose.msra.mxu0 0.0
        %357 = vmatpush.xpose.msra.mxu0 0.0
        %358 = vmatpush.xpose.msra.mxu0 0.0
        %359 = vmatpush.xpose.msra.mxu0 0.0
        %360 = vmatpush.xpose.msra.mxu0 0.0
        %361 = vmatpush.xpose.msra.mxu0 0.0
        %362 = vmatpush.xpose.msra.mxu0 %v345
        %363 = vmatmul.f32.gmra.mxu0 %v343
        %v364 = vpop.f32.mrf.mxu0
        %v365 = vadd.f32 0.0, %v364
        %366 = vdwg.mxu0
        %367 = vrot.lane.b32.xlu0 %v287, 96
        %v368 = vpop.permute.xlu0 %367
        %v369 = vsel %vm290, %v287, 0
        %v371 = vsel %vm290, %v368, 0
        %373 = vmatpush.xpose.msra.mxu0 0.0
        %374 = vmatpush.xpose.msra.mxu0 0.0
        %375 = vmatpush.xpose.msra.mxu0 0.0
        %376 = vmatpush.xpose.msra.mxu0 0.0
        %377 = vmatpush.xpose.msra.mxu0 0.0
        %378 = vmatpush.xpose.msra.mxu0 0.0
        %379 = vmatpush.xpose.msra.mxu0 0.0
        %380 = vmatpush.xpose.msra.mxu0 0.0
        %381 = vmatpush.xpose.msra.mxu0 0.0
        %382 = vmatpush.xpose.msra.mxu0 0.0
        %383 = vmatpush.xpose.msra.mxu0 0.0
        %384 = vmatpush.xpose.msra.mxu0 0.0
        %385 = vmatpush.xpose.msra.mxu0 0.0
        %386 = vmatpush.xpose.msra.mxu0 0.0
        %387 = vmatpush.xpose.msra.mxu0 0.0
        %388 = vmatpush.xpose.msra.mxu0 %v371
        %389 = vmatmul.f32.gmra.mxu0 %v369
        %v390 = vpop.f32.mrf.mxu0
        %v391 = vadd.f32 0.0, %v390
        %392 = vdwg.mxu0
        %v393 = vmul.f32 %v313, 0.35355338
        %v394 = vmul.f32 %v339, 0.35355338
        %v395 = vmul.f32 %v365, 0.35355338
        %v396 = vmul.f32 %v391, 0.35355338
        %v397 = vsel %vm290, %v393, -inf
        %398 = vmax.xlane.f32.xlu0 %v397
        %v399 = vpop.xlane.xlu0 %398
        %v400 = vsel %vm290, %v394, -inf
        %401 = vmax.xlane.f32.xlu0 %v400
        %v402 = vpop.xlane.xlu0 %401
        %v403 = vsel %vm290, %v395, -inf
        %404 = vmax.xlane.f32.xlu0 %v403
        %v405 = vpop.xlane.xlu0 %404
        %v406 = vsel %vm290, %v396, -inf
        %407 = vmax.xlane.f32.xlu0 %v406
        %v408 = vpop.xlane.xlu0 %407
        %v409 = vsub.f32 %v393, %v399
        %v410 = vsub.f32 %v394, %v402
        %v411 = vsub.f32 %v395, %v405
        %v412 = vsub.f32 %v396, %v408
        %v413 = vmul.f32 %v409, 1.442695
        %v414 = vpow.pop %v413
        %v415 = vmul.f32 %v410, 1.442695
        %v416 = vpow.pop %v415
        %v417 = vmul.f32 %v411, 1.442695
        %v418 = vpow.pop %v417
        %v419 = vmul.f32 %v412, 1.442695
        %v420 = vpow.pop %v419
        %v421 = vsel %vm290, %v414, 0.0
        %422 = vadd.xlane.f32.xlu0 %v421
        %v423 = vpop.xlane.xlu0 %422
        %v424 = vsel %vm290, %v416, 0.0
        %425 = vadd.xlane.f32.xlu0 %v424
        %v426 = vpop.xlane.xlu0 %425
        %v427 = vsel %vm290, %v418, 0.0
        %428 = vadd.xlane.f32.xlu0 %v427
        %v429 = vpop.xlane.xlu0 %428
        %v430 = vsel %vm290, %v420, 0.0
        %431 = vadd.xlane.f32.xlu0 %v430
        %v432 = vpop.xlane.xlu0 %431
        %v433 = vrcp.pop %v423
        %v434 = vrcp.pop %v426
        %v435 = vrcp.pop %v429
        %v436 = vrcp.pop %v432
        %v437 = vmul.f32 %v414, %v433
        %v438 = vmul.f32 %v416, %v434
        %v439 = vmul.f32 %v418, %v435
        %v440 = vmul.f32 %v420, %v436
        %441 = vrot.lane.b32.xlu0 %v279, 64
        %v442 = vpop.permute.xlu0 %441
        %v445 = vsel %vm290, %v437, 0
        %447 = vmatpush.msra.mxu0 0.0
        %448 = vmatpush.msra.mxu0 0.0
        %449 = vmatpush.msra.mxu0 0.0
        %450 = vmatpush.msra.mxu0 0.0
        %451 = vmatpush.msra.mxu0 0.0
        %452 = vmatpush.msra.mxu0 0.0
        %453 = vmatpush.msra.mxu0 0.0
        %454 = vmatpush.msra.mxu0 0.0
        %455 = vmatpush.msra.mxu0 0.0
        %456 = vmatpush.msra.mxu0 0.0
        %457 = vmatpush.msra.mxu0 0.0
        %458 = vmatpush.msra.mxu0 0.0
        %459 = vmatpush.msra.mxu0 0.0
        %460 = vmatpush.msra.mxu0 0.0
        %461 = vmatpush.msra.mxu0 0.0
        %462 = vmatpush.msra.mxu0 %v442
        %463 = vmatmul.f32.gmra.mxu0 %v445
        %v464 = vpop.f32.mrf.mxu0
        %v465 = vadd.f32 0.0, %v464
        %466 = vdwg.mxu0
        %467 = vrot.lane.b32.xlu0 %v283, 64
        %v468 = vpop.permute.xlu0 %467
        %v471 = vsel %vm290, %v438, 0
        %473 = vmatpush.msra.mxu0 0.0
        %474 = vmatpush.msra.mxu0 0.0
        %475 = vmatpush.msra.mxu0 0.0
        %476 = vmatpush.msra.mxu0 0.0
        %477 = vmatpush.msra.mxu0 0.0
        %478 = vmatpush.msra.mxu0 0.0
        %479 = vmatpush.msra.mxu0 0.0
        %480 = vmatpush.msra.mxu0 0.0
        %481 = vmatpush.msra.mxu0 0.0
        %482 = vmatpush.msra.mxu0 0.0
        %483 = vmatpush.msra.mxu0 0.0
        %484 = vmatpush.msra.mxu0 0.0
        %485 = vmatpush.msra.mxu0 0.0
        %486 = vmatpush.msra.mxu0 0.0
        %487 = vmatpush.msra.mxu0 0.0
        %488 = vmatpush.msra.mxu0 %v468
        %489 = vmatmul.f32.gmra.mxu0 %v471
        %v490 = vpop.f32.mrf.mxu0
        %v491 = vadd.f32 0.0, %v490
        %492 = vdwg.mxu0
        %493 = vrot.lane.b32.xlu0 %v285, 64
        %v494 = vpop.permute.xlu0 %493
        %v497 = vsel %vm290, %v439, 0
        %499 = vmatpush.msra.mxu0 0.0
        %500 = vmatpush.msra.mxu0 0.0
        %501 = vmatpush.msra.mxu0 0.0
        %502 = vmatpush.msra.mxu0 0.0
        %503 = vmatpush.msra.mxu0 0.0
        %504 = vmatpush.msra.mxu0 0.0
        %505 = vmatpush.msra.mxu0 0.0
        %506 = vmatpush.msra.mxu0 0.0
        %507 = vmatpush.msra.mxu0 0.0
        %508 = vmatpush.msra.mxu0 0.0
        %509 = vmatpush.msra.mxu0 0.0
        %510 = vmatpush.msra.mxu0 0.0
        %511 = vmatpush.msra.mxu0 0.0
        %512 = vmatpush.msra.mxu0 0.0
        %513 = vmatpush.msra.mxu0 0.0
        %514 = vmatpush.msra.mxu0 %v494
        %515 = vmatmul.f32.gmra.mxu0 %v497
        %v516 = vpop.f32.mrf.mxu0
        %v517 = vadd.f32 0.0, %v516
        %518 = vdwg.mxu0
        %519 = vrot.lane.b32.xlu0 %v287, 64
        %v520 = vpop.permute.xlu0 %519
        %v523 = vsel %vm290, %v440, 0
        %525 = vmatpush.msra.mxu0 0.0
        %526 = vmatpush.msra.mxu0 0.0
        %527 = vmatpush.msra.mxu0 0.0
        %528 = vmatpush.msra.mxu0 0.0
        %529 = vmatpush.msra.mxu0 0.0
        %530 = vmatpush.msra.mxu0 0.0
        %531 = vmatpush.msra.mxu0 0.0
        %532 = vmatpush.msra.mxu0 0.0
        %533 = vmatpush.msra.mxu0 0.0
        %534 = vmatpush.msra.mxu0 0.0
        %535 = vmatpush.msra.mxu0 0.0
        %536 = vmatpush.msra.mxu0 0.0
        %537 = vmatpush.msra.mxu0 0.0
        %538 = vmatpush.msra.mxu0 0.0
        %539 = vmatpush.msra.mxu0 0.0
        %540 = vmatpush.msra.mxu0 %v520
        %541 = vmatmul.f32.gmra.mxu0 %v523
        %v542 = vpop.f32.mrf.mxu0
        %v543 = vadd.f32 0.0, %v542
        %544 = vdwg.mxu0
        %v545 = vld [vmem:[#allocation7] sm:$0xff]
        %v546 = vld [vmem:[#allocation7 + $0x8] sm:$0xff]
        %v547 = vld [vmem:[#allocation7 + $0x10] sm:$0xff]
        %v548 = vld [vmem:[#allocation7 + $0x18] sm:$0xff]
        %v550 = vsel %vm290, %v465, 0
        %552 = vmatpush.msra.mxu0 0.0
        %553 = vmatpush.msra.mxu0 0.0
        %554 = vmatpush.msra.mxu0 0.0
        %555 = vmatpush.msra.mxu0 0.0
        %556 = vmatpush.msra.mxu0 0.0
        %557 = vmatpush.msra.mxu0 0.0
        %558 = vmatpush.msra.mxu0 0.0
        %559 = vmatpush.msra.mxu0 0.0
        %560 = vmatpush.msra.mxu0 0.0
        %561 = vmatpush.msra.mxu0 0.0
        %562 = vmatpush.msra.mxu0 0.0
        %563 = vmatpush.msra.mxu0 0.0
        %564 = vmatpush.msra.mxu0 0.0
        %565 = vmatpush.msra.mxu0 0.0
        %566 = vmatpush.msra.mxu0 0.0
        %567 = vmatpush.msra.mxu0 %v545
        %568 = vmatmul.f32.gmra.mxu0 %v550
        %v569 = vpop.f32.mrf.mxu0
        %v570 = vadd.f32 0.0, %v569
        %571 = vdwg.mxu0
        %v573 = vsel %vm290, %v491, 0
        %575 = vmatpush.msra.mxu0 0.0
        %576 = vmatpush.msra.mxu0 0.0
        %577 = vmatpush.msra.mxu0 0.0
        %578 = vmatpush.msra.mxu0 0.0
        %579 = vmatpush.msra.mxu0 0.0
        %580 = vmatpush.msra.mxu0 0.0
        %581 = vmatpush.msra.mxu0 0.0
        %582 = vmatpush.msra.mxu0 0.0
        %583 = vmatpush.msra.mxu0 0.0
        %584 = vmatpush.msra.mxu0 0.0
        %585 = vmatpush.msra.mxu0 0.0
        %586 = vmatpush.msra.mxu0 0.0
        %587 = vmatpush.msra.mxu0 0.0
        %588 = vmatpush.msra.mxu0 0.0
        %589 = vmatpush.msra.mxu0 0.0
        %590 = vmatpush.msra.mxu0 %v546
        %591 = vmatmul.f32.gmra.mxu0 %v573
        %v592 = vpop.f32.mrf.mxu0
        %v593 = vadd.f32 0.0, %v592
        %594 = vdwg.mxu0
        %v596 = vsel %vm290, %v517, 0
        %598 = vmatpush.msra.mxu0 0.0
        %599 = vmatpush.msra.mxu0 0.0
        %600 = vmatpush.msra.mxu0 0.0
        %601 = vmatpush.msra.mxu0 0.0
        %602 = vmatpush.msra.mxu0 0.0
        %603 = vmatpush.msra.mxu0 0.0
        %604 = vmatpush.msra.mxu0 0.0
        %605 = vmatpush.msra.mxu0 0.0
        %606 = vmatpush.msra.mxu0 0.0
        %607 = vmatpush.msra.mxu0 0.0
        %608 = vmatpush.msra.mxu0 0.0
        %609 = vmatpush.msra.mxu0 0.0
        %610 = vmatpush.msra.mxu0 0.0
        %611 = vmatpush.msra.mxu0 0.0
        %612 = vmatpush.msra.mxu0 0.0
        %613 = vmatpush.msra.mxu0 %v547
        %614 = vmatmul.f32.gmra.mxu0 %v596
        %v615 = vpop.f32.mrf.mxu0
        %v616 = vadd.f32 0.0, %v615
        %617 = vdwg.mxu0
        %v619 = vsel %vm290, %v543, 0
        %621 = vmatpush.msra.mxu0 0.0
        %622 = vmatpush.msra.mxu0 0.0
        %623 = vmatpush.msra.mxu0 0.0
        %624 = vmatpush.msra.mxu0 0.0
        %625 = vmatpush.msra.mxu0 0.0
        %626 = vmatpush.msra.mxu0 0.0
        %627 = vmatpush.msra.mxu0 0.0
        %628 = vmatpush.msra.mxu0 0.0
        %629 = vmatpush.msra.mxu0 0.0
        %630 = vmatpush.msra.mxu0 0.0
        %631 = vmatpush.msra.mxu0 0.0
        %632 = vmatpush.msra.mxu0 0.0
        %633 = vmatpush.msra.mxu0 0.0
        %634 = vmatpush.msra.mxu0 0.0
        %635 = vmatpush.msra.mxu0 0.0
        %636 = vmatpush.msra.mxu0 %v548
        %637 = vmatmul.f32.gmra.mxu0 %v619
        %v638 = vpop.f32.mrf.mxu0
        %v639 = vadd.f32 0.0, %v638
        %640 = vdwg.mxu0
        %v641 = vsel %vm257, %v570, 0.0
        %v642 = vsel %vm257, %v593, 0.0
        %v643 = vadd.f32 %v641, %v642
        %v644 = vsel %vm257, %v616, 0.0
        %v645 = vadd.f32 %v643, %v644
        %v646 = vsel %vm257, %v639, 0.0
        %v647 = vadd.f32 %v645, %v646
        %648 = vrot.lane.b32.xlu0 %v255, 32
        %v649 = vpop.permute.xlu0 %648
        %v651 = vadd.f32 %v647, %v649
        %652 = vst.msk [vmem:[%s247] sm:$0xff] %vm257, %v651
        %s653 = sand.u32 %s119, 1
        %s654 = scalar_lea.sflag [#allocation4], %s653
        %s655 = sand.u32 %s119, 1
        %s656 = smul.addr %s655, 8
        %s657 = scalar_lea.vmem [#allocation8], %s656
        // Predicated region
        $region49: #{tpu_custom_call.1} parent=35 // pred_check
          %p658 = pneg %p129
        $region50: #{tpu_custom_call.1} parent=35 // pred_check_branch
          %660 = sbr.rel (%p658) target = $region52
        $region51: #{tpu_custom_call.1} parent=35 // pred_region
          %662 = vsyncadd %s654, 0
          %s663 = smul.addr %s22, 8
          %s664 = scalar_lea.hbm %s4, %s663
          %s666 = sshll.u32 %s657, 4
          %s667 = int_to_ptr.vmem [resolvable:$true] %s666
          %s668 = sshll.u32 %s664, 4
          %s669 = int_to_ptr.hbm [resolvable:$true] %s668
          %671 = dma.vmem_to_hbm [thread:$0]  %s667, 128, %s669, %s654
        $region52: #{tpu_custom_call.1} parent=35 // pred_fallthru
          _
      $region36: #{tpu_custom_call.1} parent=5 // pred_fallthru
        _
      %p672 = scmp.le.s32.totalorder 2, %s17
      // Predicated region
      $region53: #{tpu_custom_call.1} parent=5 // pred_check
        %p673 = pneg %p672
      $region54: #{tpu_custom_call.1} parent=5 // pred_check_branch
        %675 = sbr.rel (%p673) target = $region56
      $region55: #{tpu_custom_call.1} parent=5 // pred_region
        %s676 = ssub.s32 %s17, 2
        // Predicated region
        $region57: #{tpu_custom_call.1} parent=55 // pred_check
          %p677 = pneg %p135
        $region58: #{tpu_custom_call.1} parent=55 // pred_check_branch
          %679 = sbr.rel (%p677) target = $region60
        $region59: #{tpu_custom_call.1} parent=55 // pred_region
          %s680 = sand.u32 %s120, 1
          %s681 = scalar_lea.sflag [#allocation4], %s680
          %s682 = sand.u32 %s120, 1
          %s683 = smul.addr %s682, 8
          %s684 = scalar_lea.vmem [#allocation8], %s683
          %686 = dma.done %s681, 128
        $region60: #{tpu_custom_call.1} parent=55 // pred_fallthru
          _
      $region56: #{tpu_custom_call.1} parent=5 // pred_fallthru
        _
    $region6: #{tpu_custom_call.1} parent=1 // loop_footer
      %s21 = sadd.s32 1, %s17
    $region7: #{tpu_custom_call.1} parent=1 // loop_footer_branch
      %16 = sbr.rel target = $region3
    $region8: #{tpu_custom_call.1} parent=1 // loop_exit
      _
    %687 = vsyncpa [#allocation3], 1
    %s688 = scalar_lea.sflag [#allocation3], 1
    %689 = vsyncpa %s688, 1
    %690 = vsyncpa [#allocation6], 1
    %691 = vsyncpa [#allocation4], 1
    %s692 = scalar_lea.sflag [#allocation4], 1
    %693 = vsyncpa %s692, 1

</llo_original>
